<compile_context>
chip_gen: v5e
topology: v5e:2x2
jax: 0.10.0
libtpu: 0.0.40
codegen_flags: <defaults>
</compile_context>

<pallas_src>
import math

import jax
import jax.numpy as jnp
from jax.experimental import pallas as pl
from jax.experimental.pallas import tpu as pltpu

_LANE = 128


# ---------------------------------------------------------------------------
# Small helpers.
# ---------------------------------------------------------------------------
def _round_up(x, m):
    return (x + m - 1) // m * m


def _pick_block(total, target, multiple=8):
    """Largest divisor of `total` that is <= target and a multiple of `multiple`.
    Falls back to `total` (full extent is always a legal BlockSpec dim)."""
    if total <= target:
        return total
    for cand in range(min(target, total), 0, -1):
        if total % cand == 0 and cand % multiple == 0:
            return cand
    return total


def _nbytes(shape, dtype):
    return math.prod(shape) * jnp.dtype(dtype).itemsize


def _vmem_limit(est_bytes):
    # Generous headroom over the estimated resident footprint, clamped to a
    # range that is safe on v5e/v6e (128 MiB) and v7x (64 MiB) alike.
    return int(min(max(4 * est_bytes + (4 << 20), 16 << 20), 64 << 20))


# ---------------------------------------------------------------------------
# Parameter preparation (done ONCE, outside the kernels).
# ---------------------------------------------------------------------------
def prepare_gru_params(W, U, bias_ih=None, bias_hh=None, *,
                       matmul_dtype=jnp.bfloat16):
    """W: (3H, I), U: (3H, H), biases: (3H,) or None.

    Returns a dict with:
      Wf  : (I,  3*Hp) matmul_dtype  - pre-transposed, gate-fused input weights
      Uf  : (Hp, 3*Hp) matmul_dtype  - pre-transposed, gate-fused hidden weights
      b_gi: (1, 3*Hp)  f32           - [b_ih_r+b_hh_r, b_ih_z+b_hh_z, b_ih_n]
      b_hn: (1, Hp)    f32           - b_hh_n (added inside the r*(.) term)
    where Hp = H rounded up to a multiple of 128 (lane-dense gate columns).
    """
    G, I = W.shape
    H = G // 3
    Hp = _round_up(H, _LANE)

    if bias_ih is None:
        bias_ih = jnp.zeros((G,), jnp.float32)
    if bias_hh is None:
        bias_hh = jnp.zeros((G,), jnp.float32)

    # Input weights: (3H, I) -> gate-major transposed (3, I, H) -> pad gate
    # columns to Hp -> fuse gates along N -> (I, 3*Hp).
    Wg = jnp.transpose(W.reshape(3, H, I), (0, 2, 1))          # (3, I, H)
    Wg = jnp.pad(Wg, ((0, 0), (0, 0), (0, Hp - H)))            # (3, I, Hp)
    Wf = jnp.transpose(Wg, (1, 0, 2)).reshape(I, 3 * Hp)       # (I, 3*Hp)

    # Hidden weights: pad both K (hidden input) and N (gate output) to Hp so a
    # zero-padded hidden state is handled exactly.
    Ug = jnp.transpose(U.reshape(3, H, H), (0, 2, 1))          # (3, K=H, N=H)
    Ug = jnp.pad(Ug, ((0, 0), (0, Hp - H), (0, Hp - H)))       # (3, Hp, Hp)
    Uf = jnp.transpose(Ug, (1, 0, 2)).reshape(Hp, 3 * Hp)      # (Hp, 3*Hp)

    bi = jnp.pad(bias_ih.reshape(3, H), ((0, 0), (0, Hp - H))).astype(jnp.float32)
    bh = jnp.pad(bias_hh.reshape(3, H), ((0, 0), (0, Hp - H))).astype(jnp.float32)
    # r/z biases combine; b_ih_n rides with the x-projection, b_hh_n must stay
    # under the reset gate (torch.nn.GRUCell semantics).
    b_gi = jnp.concatenate([bi[0] + bh[0], bi[1] + bh[1], bi[2]]).reshape(1, 3 * Hp)
    b_hn = bh[2].reshape(1, Hp)

    return dict(
        Wf=Wf.astype(matmul_dtype),
        Uf=Uf.astype(matmul_dtype),
        b_gi=b_gi,
        b_hn=b_hn,
        input_size=I,
        hidden_size=H,
        padded_hidden=Hp,
    )


# ---------------------------------------------------------------------------
# Shared in-kernel gate math (f32 pre-activations, f32 VPU/EUP math).
# ---------------------------------------------------------------------------
def _gru_gate_math(gi, gh, h32, b_hn, Hp):
    """gi, gh: (bt, 3*Hp) f32; h32: (bt, Hp) f32; b_hn: (1, Hp) f32."""
    r = jax.nn.sigmoid(gi[:, :Hp] + gh[:, :Hp])
    z = jax.nn.sigmoid(gi[:, Hp:2 * Hp] + gh[:, Hp:2 * Hp])
    n = jnp.tanh(gi[:, 2 * Hp:] + r * (gh[:, 2 * Hp:] + b_hn))
    return n + z * (h32 - n)


# ---------------------------------------------------------------------------
# Single-step GRU cell (the module's forward(input, hidden)).
# ---------------------------------------------------------------------------
def _gru_cell_kernel(x_ref, h_ref, wf_ref, uf_ref, bgi_ref, bhn_ref, out_ref):
    Hp = out_ref.shape[1]
    cd = wf_ref.dtype                       # matmul operand dtype (bf16 or f32)
    h32 = h_ref[...].astype(jnp.float32)
    gi = jnp.dot(x_ref[...].astype(cd), wf_ref[...],
                 preferred_element_type=jnp.float32) + bgi_ref[...]
    gh = jnp.dot(h32.astype(cd), uf_ref[...],
                 preferred_element_type=jnp.float32)
    out_ref[...] = _gru_gate_math(gi, gh, h32, bhn_ref[...], Hp).astype(out_ref.dtype)


def gru_cell_pallas(x, h, params, *, batch_block=256):
    """One GRU step. x: (B, I), h: (B, H); params from prepare_gru_params."""
    Wf, Uf = params["Wf"], params["Uf"]
    b_gi, b_hn = params["b_gi"], params["b_hn"]
    H, Hp = params["hidden_size"], params["padded_hidden"]
    B, I = x.shape

    hp = jnp.pad(h, ((0, 0), (0, Hp - H))) if Hp != H else h
    bt = _pick_block(B, batch_block)

    est = (_nbytes((bt, I), x.dtype) + _nbytes((bt, Hp), hp.dtype)
           + _nbytes(Wf.shape, Wf.dtype) + _nbytes(Uf.shape, Uf.dtype)
           + _nbytes(b_gi.shape, b_gi.dtype) + _nbytes(b_hn.shape, b_hn.dtype)
           + _nbytes((bt, Hp), x.dtype))

    out = pl.pallas_call(
        _gru_cell_kernel,
        out_shape=jax.ShapeDtypeStruct((B, Hp), x.dtype),
        grid_spec=pltpu.PrefetchScalarGridSpec(
            num_scalar_prefetch=0,
            grid=(B // bt,),
            in_specs=[
                pl.BlockSpec((bt, I), lambda i: (i, 0)),
                pl.BlockSpec((bt, Hp), lambda i: (i, 0)),
                # Constant index_maps: weights/biases stay VMEM-resident across
                # all batch tiles (DMA'd from HBM once).
                pl.BlockSpec((I, 3 * Hp), lambda i: (0, 0)),
                pl.BlockSpec((Hp, 3 * Hp), lambda i: (0, 0)),
                pl.BlockSpec((1, 3 * Hp), lambda i: (0, 0)),
                pl.BlockSpec((1, Hp), lambda i: (0, 0)),
            ],
            out_specs=pl.BlockSpec((bt, Hp), lambda i: (i, 0)),
        ),
        compiler_params=pltpu.CompilerParams(
            dimension_semantics=("parallel",),
            vmem_limit_bytes=_vmem_limit(est)),
    )(x, hp, Wf, Uf, b_gi, b_hn)
    return out[:, :H]


# ---------------------------------------------------------------------------
# Sequence GRU.
#   Phase 1 (fully parallel): gi = xs @ Wf + b_gi for all T*B rows.
#   Phase 2 (serial in time): only h @ Uf + gate math on the critical path,
#                             TB timesteps per grid step, f32 carry in VMEM.
# ---------------------------------------------------------------------------
def _gru_xproj_kernel(x_ref, wf_ref, bgi_ref, gi_ref):
    cd = wf_ref.dtype
    gi_ref[...] = (jnp.dot(x_ref[...].astype(cd), wf_ref[...],
                           preferred_element_type=jnp.float32)
                   + bgi_ref[...]).astype(gi_ref.dtype)


def _gru_seq_kernel(gi_ref, h0_ref, uf_ref, bhn_ref, hs_ref, h_acc):
    # NOTE: time must remain the innermost grid axis; the carry is re-seeded
    # from h0 exactly when a new batch block starts.
    @pl.when(pl.program_id(1) == 0)
    def _():
        h_acc[...] = h0_ref[...].astype(jnp.float32)

    Hp = h_acc.shape[1]
    cd = uf_ref.dtype
    b_hn = bhn_ref[...]

    def step(s, h):
        gi = gi_ref[s]                                          # (bt, 3*Hp) f32
        gh = jnp.dot(h.astype(cd), uf_ref[...],
                     preferred_element_type=jnp.float32)        # (bt, 3*Hp) f32
        h_new = _gru_gate_math(gi, gh, h, b_hn, Hp)
        hs_ref[s] = h_new.astype(hs_ref.dtype)
        return h_new

    h_acc[...] = jax.lax.fori_loop(0, gi_ref.shape[0], step, h_acc[...],
                                   unroll=True)


def gru_sequence_pallas(xs, h0, params, *, batch_block=256, time_block=16,
                        row_block=512):
    """xs: (T, B, I), h0: (B, H) -> all hidden states (T, B, H)."""
    Wf, Uf = params["Wf"], params["Uf"]
    b_gi, b_hn = params["b_gi"], params["b_hn"]
    H, Hp = params["hidden_size"], params["padded_hidden"]
    T, B, I = xs.shape

    # ---- Phase 1: hoisted input projection (M = T*B, full MXU utilization) --
    xs2d = xs.reshape(T * B, I)
    rb = _pick_block(T * B, row_block)
    est1 = (_nbytes((rb, I), xs.dtype) + _nbytes(Wf.shape, Wf.dtype)
            + _nbytes(b_gi.shape, b_gi.dtype)
            + _nbytes((rb, 3 * Hp), jnp.float32))
    gi = pl.pallas_call(
        _gru_xproj_kernel,
        out_shape=jax.ShapeDtypeStruct((T * B, 3 * Hp), jnp.float32),
        grid_spec=pltpu.PrefetchScalarGridSpec(
            num_scalar_prefetch=0,
            grid=(T * B // rb,),
            in_specs=[
                pl.BlockSpec((rb, I), lambda m: (m, 0)),
                pl.BlockSpec((I, 3 * Hp), lambda m: (0, 0)),
                pl.BlockSpec((1, 3 * Hp), lambda m: (0, 0)),
            ],
            out_specs=pl.BlockSpec((rb, 3 * Hp), lambda m: (m, 0)),
        ),
        compiler_params=pltpu.CompilerParams(
            dimension_semantics=("parallel",),
            vmem_limit_bytes=_vmem_limit(est1)),
    )(xs2d, Wf, b_gi).reshape(T, B, 3 * Hp)

    # ---- Phase 2: recurrence (only h@Uf on the serial critical path) --------
    h0p = jnp.pad(h0, ((0, 0), (0, Hp - H))) if Hp != H else h0
    bt = _pick_block(B, batch_block)
    TB = _pick_block(T, time_block, multiple=1)

    est2 = (_nbytes((TB, bt, 3 * Hp), jnp.float32) + _nbytes((bt, Hp), h0p.dtype)
            + _nbytes(Uf.shape, Uf.dtype) + _nbytes(b_hn.shape, b_hn.dtype)
            + _nbytes((TB, bt, Hp), xs.dtype) + _nbytes((bt, Hp), jnp.float32))

    hs = pl.pallas_call(
        _gru_seq_kernel,
        out_shape=jax.ShapeDtypeStruct((T, B, Hp), xs.dtype),
        grid_spec=pltpu.PrefetchScalarGridSpec(
            num_scalar_prefetch=0,
            grid=(B // bt, T // TB),
            in_specs=[
                pl.BlockSpec((TB, bt, 3 * Hp), lambda bi, tb: (tb, bi, 0)),
                pl.BlockSpec((bt, Hp), lambda bi, tb: (bi, 0)),
                # Hidden weights / bias resident across the whole grid.
                pl.BlockSpec((Hp, 3 * Hp), lambda bi, tb: (0, 0)),
                pl.BlockSpec((1, Hp), lambda bi, tb: (0, 0)),
            ],
            out_specs=pl.BlockSpec((TB, bt, Hp), lambda bi, tb: (tb, bi, 0)),
            scratch_shapes=[pltpu.VMEM((bt, Hp), jnp.float32)],
        ),
        compiler_params=pltpu.CompilerParams(
            dimension_semantics=("parallel", "arbitrary"),
            vmem_limit_bytes=_vmem_limit(est2)),
    )(gi, h0p, Uf, b_hn)
    return hs[:, :, :H]


# ---------------------------------------------------------------------------
# Pure-JAX references (torch.nn.GRUCell semantics).
# ---------------------------------------------------------------------------
def gru_cell_ref(x, h, W, U, bias_ih, bias_hh):
    H = h.shape[1]
    gi = x @ W.T + bias_ih
    gh = h @ U.T + bias_hh
    i_r, i_z, i_n = gi[:, :H], gi[:, H:2 * H], gi[:, 2 * H:]
    h_r, h_z, h_n = gh[:, :H], gh[:, H:2 * H], gh[:, 2 * H:]
    r = jax.nn.sigmoid(i_r + h_r)
    z = jax.nn.sigmoid(i_z + h_z)
    n = jnp.tanh(i_n + r * h_n)
    return n + z * (h - n)


def gru_sequence_ref(xs, h0, W, U, bias_ih, bias_hh):
    def step(h, x):
        h_new = gru_cell_ref(x, h, W, U, bias_ih, bias_hh)
        return h_new, h_new
    _, hs = jax.lax.scan(step, h0, xs)
    return hs


# ---------------------------------------------------------------------------
# Demo / correctness check.
# ---------------------------------------------------------------------------
if __name__ == "__main__":
    key = jax.random.PRNGKey(0)
    B, input_size, hidden_size, T = 8, 32, 32, 8
    gate_size = 3 * hidden_size

    k_x, k_h, k_w, k_u, k_bih, k_bhh, k_xs = jax.random.split(key, 7)

    # Deterministic parameter init matching the module's uniform(-std, std).
    std = 1.0 / math.sqrt(hidden_size)
    W = jax.random.uniform(k_w, (gate_size, input_size), jnp.float32, -std, std)
    U = jax.random.uniform(k_u, (gate_size, hidden_size), jnp.float32, -std, std)
    bias_ih = jax.random.uniform(k_bih, (gate_size,), jnp.float32, -std, std)
    bias_hh = jax.random.uniform(k_bhh, (gate_size,), jnp.float32, -std, std)

    x = jax.random.normal(k_x, (B, input_size), jnp.float32)
    h = jax.random.normal(k_h, (B, hidden_size), jnp.float32)
    xs = jax.random.normal(k_xs, (T, B, input_size), jnp.float32)

    ref_cell = gru_cell_ref(x, h, W, U, bias_ih, bias_hh)
    ref_seq = gru_sequence_ref(xs, h, W, U, bias_ih, bias_hh)

    # --- exact path (f32 matmul operands): tight check ----------------------
    p32 = prepare_gru_params(W, U, bias_ih, bias_hh, matmul_dtype=jnp.float32)
    out32 = jax.block_until_ready(gru_cell_pallas(x, h, p32))
    hs32 = jax.block_until_ready(gru_sequence_pallas(xs, h, p32))
    assert out32.shape == (B, hidden_size)
    assert hs32.shape == (T, B, hidden_size)
    assert jnp.allclose(out32, ref_cell, atol=1e-5, rtol=1e-5), "f32 cell mismatch"
    assert jnp.allclose(hs32, ref_seq, atol=1e-4, rtol=1e-4), "f32 sequence mismatch"

    # --- default path (bf16 MXU operands, f32 carry/activations): sane check -
    pbf = prepare_gru_params(W, U, bias_ih, bias_hh, matmul_dtype=jnp.bfloat16)
    outbf = jax.block_until_ready(gru_cell_pallas(x, h, pbf))
    hsbf = jax.block_until_ready(gru_sequence_pallas(xs, h, pbf))
    assert jnp.allclose(outbf, ref_cell, atol=5e-2, rtol=5e-2), "bf16 cell mismatch"
    assert jnp.allclose(hsbf, ref_seq, atol=1e-1, rtol=1e-1), "bf16 sequence mismatch"

    print("KERNEL_OK")
</pallas_src>

<mosaic_0001>
module attributes {stable_mosaic.version = 11 : i64} {
  func.func @_gru_cell_kernel(%arg0: i32, %arg1: memref<8x32xf32, #tpu.memory_space<vmem>>, %arg2: memref<8x128xf32, #tpu.memory_space<vmem>>, %arg3: memref<32x384xf32, #tpu.memory_space<vmem>>, %arg4: memref<128x384xf32, #tpu.memory_space<vmem>>, %arg5: memref<1x384xf32, #tpu.memory_space<vmem>>, %arg6: memref<1x128xf32, #tpu.memory_space<vmem>>, %arg7: memref<8x128xf32, #tpu.memory_space<vmem>>) attributes {dimension_semantics = [#tpu.dimension_semantics<parallel>], iteration_bounds = array<i64: 1>, scalar_prefetch = 0 : i64, scratch_operands = 0 : i64, tpu.core_type = #tpu.core_type<tc>, window_params = [{transform_indices = @transform_0, window_bounds = array<i64: 8, 32>}, {transform_indices = @transform_1, window_bounds = array<i64: 8, 128>}, {pipeline_mode = #tpu.pipeline_mode<synchronous>, transform_indices = @transform_2, window_bounds = array<i64: 32, 384>}, {pipeline_mode = #tpu.pipeline_mode<synchronous>, transform_indices = @transform_3, window_bounds = array<i64: 128, 384>}, {pipeline_mode = #tpu.pipeline_mode<synchronous>, transform_indices = @transform_4, window_bounds = array<i64: 1, 384>}, {pipeline_mode = #tpu.pipeline_mode<synchronous>, transform_indices = @transform_5, window_bounds = array<i64: 1, 128>}, {transform_indices = @transform_6, window_bounds = array<i64: 8, 128>}]} {
    %c0 = arith.constant 0 : index
    %c0_0 = arith.constant 0 : index
    %0 = vector.load %arg2[%c0, %c0_0] : memref<8x128xf32, #tpu.memory_space<vmem>>, vector<8x128xf32>
    %c0_1 = arith.constant 0 : index
    %c0_2 = arith.constant 0 : index
    %1 = vector.load %arg1[%c0_1, %c0_2] : memref<8x32xf32, #tpu.memory_space<vmem>>, vector<8x32xf32>
    %c0_3 = arith.constant 0 : index
    %c0_4 = arith.constant 0 : index
    %2 = vector.load %arg3[%c0_3, %c0_4] : memref<32x384xf32, #tpu.memory_space<vmem>>, vector<32x384xf32>
    %cst = arith.constant dense<0.000000e+00> : vector<8x384xf32>
    %3 = tpu.matmul %1, %2, %cst {dimension_numbers = #tpu.dot_dimension_numbers<[1], [0], [0], [1], [0, 0, 1, 1], [], []>} : vector<8x32xf32>, vector<32x384xf32>, vector<8x384xf32> -> vector<8x384xf32>
    %c0_5 = arith.constant 0 : index
    %c0_6 = arith.constant 0 : index
    %4 = vector.load %arg5[%c0_5, %c0_6] : memref<1x384xf32, #tpu.memory_space<vmem>>, vector<1x384xf32>
    %5 = vector.broadcast %4 : vector<1x384xf32> to vector<8x384xf32>
    %6 = arith.addf %3, %5 : vector<8x384xf32>
    %c0_7 = arith.constant 0 : index
    %c0_8 = arith.constant 0 : index
    %7 = vector.load %arg4[%c0_7, %c0_8] : memref<128x384xf32, #tpu.memory_space<vmem>>, vector<128x384xf32>
    %cst_9 = arith.constant dense<0.000000e+00> : vector<8x384xf32>
    %8 = tpu.matmul %0, %7, %cst_9 {dimension_numbers = #tpu.dot_dimension_numbers<[1], [0], [0], [1], [0, 0, 1, 1], [], []>} : vector<8x128xf32>, vector<128x384xf32>, vector<8x384xf32> -> vector<8x384xf32>
    %c0_10 = arith.constant 0 : index
    %c0_11 = arith.constant 0 : index
    %9 = vector.load %arg6[%c0_10, %c0_11] : memref<1x128xf32, #tpu.memory_space<vmem>>, vector<1x128xf32>
    %10 = vector.extract_strided_slice %6 {offsets = [0, 0], sizes = [8, 128], strides = [1, 1]} : vector<8x384xf32> to vector<8x128xf32>
    %11 = vector.extract_strided_slice %8 {offsets = [0, 0], sizes = [8, 128], strides = [1, 1]} : vector<8x384xf32> to vector<8x128xf32>
    %12 = arith.addf %10, %11 : vector<8x128xf32>
    %13 = arith.negf %12 : vector<8x128xf32>
    %14 = math.exp %13 : vector<8x128xf32>
    %cst_12 = arith.constant 1.000000e+00 : f32
    %15 = vector.broadcast %cst_12 : f32 to vector<8x128xf32>
    %16 = arith.addf %15, %14 : vector<8x128xf32>
    %17 = arith.divf %15, %16 : vector<8x128xf32>
    %18 = vector.extract_strided_slice %6 {offsets = [0, 128], sizes = [8, 128], strides = [1, 1]} : vector<8x384xf32> to vector<8x128xf32>
    %19 = vector.extract_strided_slice %8 {offsets = [0, 128], sizes = [8, 128], strides = [1, 1]} : vector<8x384xf32> to vector<8x128xf32>
    %20 = arith.addf %18, %19 : vector<8x128xf32>
    %21 = arith.negf %20 : vector<8x128xf32>
    %22 = math.exp %21 : vector<8x128xf32>
    %cst_13 = arith.constant 1.000000e+00 : f32
    %23 = vector.broadcast %cst_13 : f32 to vector<8x128xf32>
    %24 = arith.addf %23, %22 : vector<8x128xf32>
    %25 = arith.divf %23, %24 : vector<8x128xf32>
    %26 = vector.extract_strided_slice %6 {offsets = [0, 256], sizes = [8, 128], strides = [1, 1]} : vector<8x384xf32> to vector<8x128xf32>
    %27 = vector.extract_strided_slice %8 {offsets = [0, 256], sizes = [8, 128], strides = [1, 1]} : vector<8x384xf32> to vector<8x128xf32>
    %28 = vector.broadcast %9 : vector<1x128xf32> to vector<8x128xf32>
    %29 = arith.addf %27, %28 : vector<8x128xf32>
    %30 = arith.mulf %17, %29 : vector<8x128xf32>
    %31 = arith.addf %26, %30 : vector<8x128xf32>
    %32 = math.tanh %31 : vector<8x128xf32>
    %33 = arith.subf %0, %32 : vector<8x128xf32>
    %34 = arith.mulf %25, %33 : vector<8x128xf32>
    %35 = arith.addf %32, %34 : vector<8x128xf32>
    %c0_14 = arith.constant 0 : index
    %c0_15 = arith.constant 0 : index
    %36 = vector.load %arg7[%c0_14, %c0_15] : memref<8x128xf32, #tpu.memory_space<vmem>>, vector<8x128xf32>
    tpu.vector_store %arg7[%c0_14, %c0_15], %35 {strides = array<i32>} : memref<8x128xf32, #tpu.memory_space<vmem>>, vector<8x128xf32>,
    return
  }
  func.func @transform_0(%arg0: i32) -> (i32, i32) {
    %c0_i32 = arith.constant 0 : i32
    %c0_i32_0 = arith.constant 0 : i32
    return %arg0, %c0_i32 : i32, i32
  }
  func.func @transform_1(%arg0: i32) -> (i32, i32) {
    %c0_i32 = arith.constant 0 : i32
    %c0_i32_0 = arith.constant 0 : i32
    return %arg0, %c0_i32 : i32, i32
  }
  func.func @transform_2(%arg0: i32) -> (i32, i32) {
    %c0_i32 = arith.constant 0 : i32
    %c0_i32_0 = arith.constant 0 : i32
    %c0_i32_1 = arith.constant 0 : i32
    return %c0_i32, %c0_i32_0 : i32, i32
  }
  func.func @transform_3(%arg0: i32) -> (i32, i32) {
    %c0_i32 = arith.constant 0 : i32
    %c0_i32_0 = arith.constant 0 : i32
    %c0_i32_1 = arith.constant 0 : i32
    return %c0_i32, %c0_i32_0 : i32, i32
  }
  func.func @transform_4(%arg0: i32) -> (i32, i32) {
    %c0_i32 = arith.constant 0 : i32
    %c0_i32_0 = arith.constant 0 : i32
    %c0_i32_1 = arith.constant 0 : i32
    return %c0_i32, %c0_i32_0 : i32, i32
  }
  func.func @transform_5(%arg0: i32) -> (i32, i32) {
    %c0_i32 = arith.constant 0 : i32
    %c0_i32_0 = arith.constant 0 : i32
    %c0_i32_1 = arith.constant 0 : i32
    return %c0_i32, %c0_i32_0 : i32, i32
  }
  func.func @transform_6(%arg0: i32) -> (i32, i32) {
    %c0_i32 = arith.constant 0 : i32
    %c0_i32_0 = arith.constant 0 : i32
    return %arg0, %c0_i32 : i32, i32
  }
}

</mosaic_0001>

<llo_original>
// kernel: tpu_custom_call.1
$region0: #{tpu_custom_call.1}
  #allocation0 [shape = 'u32[]', space=smem, size = 0x4, offset = 0x4, fixed_abs, tag = 'smem constant byte address 0x4 - core index']
  #allocation1 [shape = 'u32[72,128]{1,0:T(1,128)}', space=vmem, size = 0x9000, scoped, tag = 'internal scratch']
  %s0 = inlined_call_operand.hbm [shape: f32[8,32], index: 0, kind: input, shape index: {}]
  %s1 = inlined_call_operand.hbm [shape: f32[8,128], index: 1, kind: input, shape index: {}]
  %s2 = inlined_call_operand.hbm [shape: f32[32,384], index: 2, kind: input, shape index: {}]
  %s3 = inlined_call_operand.hbm [shape: f32[128,384], index: 3, kind: input, shape index: {}]
  %s4 = inlined_call_operand.vmem [shape: f32[1,384], index: 4, kind: input, shape index: {}]
  %s5 = inlined_call_operand.vmem [shape: f32[1,128], index: 5, kind: input, shape index: {}]
  %s6 = inlined_call_operand.hbm [shape: f32[8,128], index: 6, kind: output, shape index: {}]
  %s7 = sld [smem:[#allocation0]]
  $region50: #{tpu_custom_call.1} parent=0
    _
  %s9 = ssub.s32 1, %s7
  %s10 = scalar_select 0, %s9, %s7
  $region1: #{tpu_custom_call.1} parent=0
    #allocation2 [shape = 'u8[4096]{0}', space=vmem, size = 0x1000, scoped, tag = 'input window, operand 0, single buffered']
    #allocation3 [shape = 's32[1]{0}', space=sflag, size = 0x4, scoped, tag = 'scoped memory for tpu_custom_call.1']
    #allocation4 [shape = 's32[1]{0}', space=sflag, size = 0x4, scoped, tag = 'scoped memory for tpu_custom_call.1']
    #allocation5 [shape = 'u8[4096]{0}', space=vmem, size = 0x1000, scoped, tag = 'input window, operand 1, single buffered']
    #allocation6 [shape = 's32[1]{0}', space=sflag, size = 0x4, scoped, tag = 'scoped memory for tpu_custom_call.1']
    #allocation7 [shape = 'u8[49152]{0}', space=vmem, size = 0xc000, scoped, tag = 'input window, operand 2, single buffered']
    #allocation8 [shape = 'u8[196608]{0}', space=vmem, size = 0x30000, scoped, tag = 'input window, operand 3, single buffered']
    #allocation9 [shape = 's32[1]{0}', space=sflag, size = 0x4, scoped, tag = 'scoped memory for tpu_custom_call.1']
    #allocation10 [shape = 'u8[4096]{0}', space=vmem, size = 0x1000, scoped, tag = 'output window, operand 0, single buffered']
    %11 = vsyncpa [#allocation3], 0
    %12 = vsyncpa [#allocation6], 0
    %13 = vsyncpa [#allocation9], 0
    %14 = vsyncpa [#allocation4], 0
    // Predicated region
    $region2: #{tpu_custom_call.1} parent=1 // pred_check
      _
    $region3: #{tpu_custom_call.1} parent=1 // pred_check_branch
      %16 = sbr.rel (0) target = $region5
    $region4: #{tpu_custom_call.1} parent=1 // pred_region
      %18 = vsyncadd [#allocation3], 0
      %s20 = sshll.u32 %s0, 4
      %s21 = int_to_ptr.hbm [resolvable:$true] %s20
      %s22 = sshll.u32 [#allocation2], 4
      %s23 = int_to_ptr.vmem [resolvable:$true] %s22
      %25 = dma.hbm_to_vmem [thread:$0]  %s21, 128, %s23, [#allocation3]
    $region5: #{tpu_custom_call.1} parent=1 // pred_fallthru
      _
    // Predicated region
    $region6: #{tpu_custom_call.1} parent=1 // pred_check
      _
    $region7: #{tpu_custom_call.1} parent=1 // pred_check_branch
      %27 = sbr.rel (0) target = $region9
    $region8: #{tpu_custom_call.1} parent=1 // pred_region
      %29 = vsyncadd [#allocation6], 0
      %s31 = sshll.u32 %s1, 4
      %s32 = int_to_ptr.hbm [resolvable:$true] %s31
      %s33 = sshll.u32 [#allocation5], 4
      %s34 = int_to_ptr.vmem [resolvable:$true] %s33
      %36 = dma.hbm_to_vmem [thread:$0]  %s32, 128, %s34, [#allocation6]
    $region9: #{tpu_custom_call.1} parent=1 // pred_fallthru
      _
    // Predicated region
    $region10: #{tpu_custom_call.1} parent=1 // pred_check
      _
    $region11: #{tpu_custom_call.1} parent=1 // pred_check_branch
      %38 = sbr.rel (0) target = $region13
    $region12: #{tpu_custom_call.1} parent=1 // pred_region
      %40 = vsyncadd [#allocation6], 0
      %s41 = sshll.u32 %s2, 4
      %s42 = int_to_ptr.hbm [resolvable:$true] %s41
      %s43 = sshll.u32 [#allocation7], 4
      %s44 = int_to_ptr.vmem [resolvable:$true] %s43
      %49 = dma.hbm_to_vmem [thread:$0]  %s42, 1536, %s44, [#allocation6], 384, 384, 24
    $region13: #{tpu_custom_call.1} parent=1 // pred_fallthru
      _
    // Predicated region
    $region14: #{tpu_custom_call.1} parent=1 // pred_check
      _
    $region15: #{tpu_custom_call.1} parent=1 // pred_check_branch
      %51 = sbr.rel (0) target = $region17
    $region16: #{tpu_custom_call.1} parent=1 // pred_region
      %53 = vsyncadd [#allocation9], 0
      %s54 = sshll.u32 %s3, 4
      %s55 = int_to_ptr.hbm [resolvable:$true] %s54
      %s56 = sshll.u32 [#allocation8], 4
      %s57 = int_to_ptr.vmem [resolvable:$true] %s56
      %62 = dma.hbm_to_vmem [thread:$0]  %s55, 6144, %s57, [#allocation9], 384, 384, 24
    $region17: #{tpu_custom_call.1} parent=1 // pred_fallthru
      _
    // Predicated region
    $region18: #{tpu_custom_call.1} parent=1 // pred_check
      _
    $region19: #{tpu_custom_call.1} parent=1 // pred_check_branch
      %64 = sbr.rel (0) target = $region21
    $region20: #{tpu_custom_call.1} parent=1 // pred_region
      _
    $region21: #{tpu_custom_call.1} parent=1 // pred_fallthru
      _
    // Predicated region
    $region22: #{tpu_custom_call.1} parent=1 // pred_check
      _
    $region23: #{tpu_custom_call.1} parent=1 // pred_check_branch
      %66 = sbr.rel (0) target = $region25
    $region24: #{tpu_custom_call.1} parent=1 // pred_region
      _
    $region25: #{tpu_custom_call.1} parent=1 // pred_fallthru
      _
    // Predicated region
    $region26: #{tpu_custom_call.1} parent=1 // pred_check
      _
    $region27: #{tpu_custom_call.1} parent=1 // pred_check_branch
      %68 = sbr.rel (0) target = $region29
    $region28: #{tpu_custom_call.1} parent=1 // pred_region
      %70 = dma.done [#allocation3], 128
    $region29: #{tpu_custom_call.1} parent=1 // pred_fallthru
      _
    // Predicated region
    $region30: #{tpu_custom_call.1} parent=1 // pred_check
      _
    $region31: #{tpu_custom_call.1} parent=1 // pred_check_branch
      %72 = sbr.rel (0) target = $region33
    $region32: #{tpu_custom_call.1} parent=1 // pred_region
      %74 = dma.done [#allocation6], 128
    $region33: #{tpu_custom_call.1} parent=1 // pred_fallthru
      _
    // Predicated region
    $region34: #{tpu_custom_call.1} parent=1 // pred_check
      _
    $region35: #{tpu_custom_call.1} parent=1 // pred_check_branch
      %76 = sbr.rel (0) target = $region37
    $region36: #{tpu_custom_call.1} parent=1 // pred_region
      %78 = dma.done [#allocation6], 1536
    $region37: #{tpu_custom_call.1} parent=1 // pred_fallthru
      _
    // Predicated region
    $region38: #{tpu_custom_call.1} parent=1 // pred_check
      _
    $region39: #{tpu_custom_call.1} parent=1 // pred_check_branch
      %80 = sbr.rel (0) target = $region41
    $region40: #{tpu_custom_call.1} parent=1 // pred_region
      %82 = dma.done [#allocation9], 6144
    $region41: #{tpu_custom_call.1} parent=1 // pred_fallthru
      _
    %v83 = vld [vmem:[#allocation5] sm:$0xff]
    %v84 = vld [vmem:[#allocation2] sm:$0xff]
    %v85 = vld [vmem:[#allocation7] sm:$0xff]
    %v86 = vld [vmem:[#allocation7 + $0x8] sm:$0xff]
    %v87 = vld [vmem:[#allocation7 + $0x10] sm:$0xff]
    %v88 = vld [vmem:[#allocation7 + $0x18] sm:$0xff]
    %v89 = vld [vmem:[#allocation7 + $0x20] sm:$0xff]
    %v90 = vld [vmem:[#allocation7 + $0x28] sm:$0xff]
    %v91 = vld [vmem:[#allocation7 + $0x30] sm:$0xff]
    %v92 = vld [vmem:[#allocation7 + $0x38] sm:$0xff]
    %v93 = vld [vmem:[#allocation7 + $0x40] sm:$0xff]
    %v94 = vld [vmem:[#allocation7 + $0x48] sm:$0xff]
    %v95 = vld [vmem:[#allocation7 + $0x50] sm:$0xff]
    %v96 = vld [vmem:[#allocation7 + $0x58] sm:$0xff]
    %v97 = vld [vmem:[%s4] sm:$0x7]
    %v99 = vperm.slane %v97, 0
    %v100 = vperm.slane %v97, 1
    %v101 = vperm.slane %v97, 2
    %vm105 = vcmask 261120
    %v107 = vsel %vm105, %v84, 0
    %109 = vmatpush.msra.mxu0 0.0
    %110 = vmatpush.msra.mxu0 0.0
    %111 = vmatpush.msra.mxu0 0.0
    %112 = vmatpush.msra.mxu0 0.0
    %113 = vmatpush.msra.mxu0 0.0
    %114 = vmatpush.msra.mxu0 0.0
    %115 = vmatpush.msra.mxu0 0.0
    %116 = vmatpush.msra.mxu0 0.0
    %117 = vmatpush.msra.mxu0 0.0
    %118 = vmatpush.msra.mxu0 0.0
    %119 = vmatpush.msra.mxu0 0.0
    %120 = vmatpush.msra.mxu0 0.0
    %121 = vmatpush.msra.mxu0 %v94
    %122 = vmatpush.msra.mxu0 %v91
    %123 = vmatpush.msra.mxu0 %v88
    %124 = vmatpush.msra.mxu0 %v85
    %125 = vmatmul.f32.gmra.mxu0 %v107
    %v126 = vpop.f32.mrf.mxu0
    %v127 = vadd.f32 %v99, %v126
    %128 = vdwg.mxu0
    %129 = vmatpush.msra.mxu0 0.0
    %130 = vmatpush.msra.mxu0 0.0
    %131 = vmatpush.msra.mxu0 0.0
    %132 = vmatpush.msra.mxu0 0.0
    %133 = vmatpush.msra.mxu0 0.0
    %134 = vmatpush.msra.mxu0 0.0
    %135 = vmatpush.msra.mxu0 0.0
    %136 = vmatpush.msra.mxu0 0.0
    %137 = vmatpush.msra.mxu0 0.0
    %138 = vmatpush.msra.mxu0 0.0
    %139 = vmatpush.msra.mxu0 0.0
    %140 = vmatpush.msra.mxu0 0.0
    %141 = vmatpush.msra.mxu0 %v95
    %142 = vmatpush.msra.mxu0 %v92
    %143 = vmatpush.msra.mxu0 %v89
    %144 = vmatpush.msra.mxu0 %v86
    %145 = vmatmul.f32.gmra.mxu0 %v107
    %v146 = vpop.f32.mrf.mxu0
    %v147 = vadd.f32 %v100, %v146
    %148 = vdwg.mxu0
    %149 = vmatpush.msra.mxu0 0.0
    %150 = vmatpush.msra.mxu0 0.0
    %151 = vmatpush.msra.mxu0 0.0
    %152 = vmatpush.msra.mxu0 0.0
    %153 = vmatpush.msra.mxu0 0.0
    %154 = vmatpush.msra.mxu0 0.0
    %155 = vmatpush.msra.mxu0 0.0
    %156 = vmatpush.msra.mxu0 0.0
    %157 = vmatpush.msra.mxu0 0.0
    %158 = vmatpush.msra.mxu0 0.0
    %159 = vmatpush.msra.mxu0 0.0
    %160 = vmatpush.msra.mxu0 0.0
    %161 = vmatpush.msra.mxu0 %v96
    %162 = vmatpush.msra.mxu0 %v93
    %163 = vmatpush.msra.mxu0 %v90
    %164 = vmatpush.msra.mxu0 %v87
    %165 = vmatmul.f32.gmra.mxu0 %v107
    %v166 = vpop.f32.mrf.mxu0
    %v167 = vadd.f32 %v101, %v166
    %168 = vdwg.mxu0
    %v169 = vld [vmem:[#allocation8] sm:$0xff]
    %v170 = vld [vmem:[#allocation8 + $0x8] sm:$0xff]
    %v171 = vld [vmem:[#allocation8 + $0x10] sm:$0xff]
    %v172 = vld [vmem:[#allocation8 + $0x18] sm:$0xff]
    %v173 = vld [vmem:[#allocation8 + $0x20] sm:$0xff]
    %v174 = vld [vmem:[#allocation8 + $0x28] sm:$0xff]
    %v175 = vld [vmem:[#allocation8 + $0x30] sm:$0xff]
    %v176 = vld [vmem:[#allocation8 + $0x38] sm:$0xff]
    %v177 = vld [vmem:[#allocation8 + $0x40] sm:$0xff]
    %v178 = vld [vmem:[#allocation8 + $0x48] sm:$0xff]
    %v179 = vld [vmem:[#allocation8 + $0x50] sm:$0xff]
    %v180 = vld [vmem:[#allocation8 + $0x58] sm:$0xff]
    %v181 = vld [vmem:[#allocation8 + $0x60] sm:$0xff]
    %v182 = vld [vmem:[#allocation8 + $0x68] sm:$0xff]
    %v183 = vld [vmem:[#allocation8 + $0x70] sm:$0xff]
    %v184 = vld [vmem:[#allocation8 + $0x78] sm:$0xff]
    %v185 = vld [vmem:[#allocation8 + $0x80] sm:$0xff]
    %v186 = vld [vmem:[#allocation8 + $0x88] sm:$0xff]
    %v187 = vld [vmem:[#allocation8 + $0x90] sm:$0xff]
    %v188 = vld [vmem:[#allocation8 + $0x98] sm:$0xff]
    %v189 = vld [vmem:[#allocation8 + $0xa0] sm:$0xff]
    %v190 = vld [vmem:[#allocation8 + $0xa8] sm:$0xff]
    %v191 = vld [vmem:[#allocation8 + $0xb0] sm:$0xff]
    %v192 = vld [vmem:[#allocation8 + $0xb8] sm:$0xff]
    %v193 = vld [vmem:[#allocation8 + $0xc0] sm:$0xff]
    %v194 = vld [vmem:[#allocation8 + $0xc8] sm:$0xff]
    %v195 = vld [vmem:[#allocation8 + $0xd0] sm:$0xff]
    %v196 = vld [vmem:[#allocation8 + $0xd8] sm:$0xff]
    %v197 = vld [vmem:[#allocation8 + $0xe0] sm:$0xff]
    %v198 = vld [vmem:[#allocation8 + $0xe8] sm:$0xff]
    %v199 = vld [vmem:[#allocation8 + $0xf0] sm:$0xff]
    %v200 = vld [vmem:[#allocation8 + $0xf8] sm:$0xff]
    %v201 = vld [vmem:[#allocation8 + $0x100] sm:$0xff]
    %v202 = vld [vmem:[#allocation8 + $0x108] sm:$0xff]
    %v203 = vld [vmem:[#allocation8 + $0x110] sm:$0xff]
    %v204 = vld [vmem:[#allocation8 + $0x118] sm:$0xff]
    %v205 = vld [vmem:[#allocation8 + $0x120] sm:$0xff]
    %v206 = vld [vmem:[#allocation8 + $0x128] sm:$0xff]
    %v207 = vld [vmem:[#allocation8 + $0x130] sm:$0xff]
    %v208 = vld [vmem:[#allocation8 + $0x138] sm:$0xff]
    %v209 = vld [vmem:[#allocation8 + $0x140] sm:$0xff]
    %v210 = vld [vmem:[#allocation8 + $0x148] sm:$0xff]
    %v211 = vld [vmem:[#allocation8 + $0x150] sm:$0xff]
    %v212 = vld [vmem:[#allocation8 + $0x158] sm:$0xff]
    %v213 = vld [vmem:[#allocation8 + $0x160] sm:$0xff]
    %v214 = vld [vmem:[#allocation8 + $0x168] sm:$0xff]
    %v215 = vld [vmem:[#allocation8 + $0x170] sm:$0xff]
    %v216 = vld [vmem:[#allocation8 + $0x178] sm:$0xff]
    %217 = vmatpush.msra.mxu0 %v214
    %218 = vmatpush.msra.mxu0 %v211
    %219 = vmatpush.msra.mxu0 %v208
    %220 = vmatpush.msra.mxu0 %v205
    %221 = vmatpush.msra.mxu0 %v202
    %222 = vmatpush.msra.mxu0 %v199
    %223 = vmatpush.msra.mxu0 %v196
    %224 = vmatpush.msra.mxu0 %v193
    %225 = vmatpush.msra.mxu0 %v190
    %226 = vmatpush.msra.mxu0 %v187
    %227 = vmatpush.msra.mxu0 %v184
    %228 = vmatpush.msra.mxu0 %v181
    %229 = vmatpush.msra.mxu0 %v178
    %230 = vmatpush.msra.mxu0 %v175
    %231 = vmatpush.msra.mxu0 %v172
    %232 = vmatpush.msra.mxu0 %v169
    %233 = vmatmul.f32.gmra.mxu0 %v83
    %v234 = vpop.f32.mrf.mxu0
    %v235 = vadd.f32 0.0, %v234
    %236 = vdwg.mxu0
    %237 = vmatpush.msra.mxu0 %v215
    %238 = vmatpush.msra.mxu0 %v212
    %239 = vmatpush.msra.mxu0 %v209
    %240 = vmatpush.msra.mxu0 %v206
    %241 = vmatpush.msra.mxu0 %v203
    %242 = vmatpush.msra.mxu0 %v200
    %243 = vmatpush.msra.mxu0 %v197
    %244 = vmatpush.msra.mxu0 %v194
    %245 = vmatpush.msra.mxu0 %v191
    %246 = vmatpush.msra.mxu0 %v188
    %247 = vmatpush.msra.mxu0 %v185
    %248 = vmatpush.msra.mxu0 %v182
    %249 = vmatpush.msra.mxu0 %v179
    %250 = vmatpush.msra.mxu0 %v176
    %251 = vmatpush.msra.mxu0 %v173
    %252 = vmatpush.msra.mxu0 %v170
    %253 = vmatmul.f32.gmra.mxu0 %v83
    %v254 = vpop.f32.mrf.mxu0
    %v255 = vadd.f32 0.0, %v254
    %256 = vdwg.mxu0
    %257 = vmatpush.msra.mxu0 %v216
    %258 = vmatpush.msra.mxu0 %v213
    %259 = vmatpush.msra.mxu0 %v210
    %260 = vmatpush.msra.mxu0 %v207
    %261 = vmatpush.msra.mxu0 %v204
    %262 = vmatpush.msra.mxu0 %v201
    %263 = vmatpush.msra.mxu0 %v198
    %264 = vmatpush.msra.mxu0 %v195
    %265 = vmatpush.msra.mxu0 %v192
    %266 = vmatpush.msra.mxu0 %v189
    %267 = vmatpush.msra.mxu0 %v186
    %268 = vmatpush.msra.mxu0 %v183
    %269 = vmatpush.msra.mxu0 %v180
    %270 = vmatpush.msra.mxu0 %v177
    %271 = vmatpush.msra.mxu0 %v174
    %272 = vmatpush.msra.mxu0 %v171
    %273 = vmatmul.f32.gmra.mxu0 %v83
    %v274 = vpop.f32.mrf.mxu0
    %v275 = vadd.f32 0.0, %v274
    %276 = vdwg.mxu0
    %v277 = vld [vmem:[%s5] sm:$0x1]
    %v278 = vadd.f32 %v127, %v235
    %v279 = vxor.u32 %v278, 2147483648
    %v280 = vmul.f32 %v279, 1.442695
    %v281 = vpow.pop %v280
    %v282 = vadd.f32 %v281, 1.0
    %v283 = vrcp.pop %v282
    %v284 = vmul.f32 %v282, %v283
    %v285 = vsub.f32 1.0, %v284
    %v286 = vmul.f32 %v283, %v285
    %v287 = vadd.f32 %v283, %v286
    %vm288 = vweird.f32 %v282
    %vm289 = vweird.f32 %v283
    %vm290 = vmor %vm288, %vm289
    %v291 = vsel %vm290, %v283, %v287
    %v292 = vand.u32 2147483647, %v282
    %vm293 = vcmp.eq.f32.partialorder %v292, 8.507059e+37
    %v294 = vand.u32 %v282, 2147483648
    %v295 = vor.u32 1.1754944e-38, %v294
    %v296 = vsel %vm293, %v295, %v291
    %v297 = vmul.f32 1.0, %v296
    %v298 = vadd.f32 %v147, %v255
    %v299 = vxor.u32 %v298, 2147483648
    %v300 = vmul.f32 %v299, 1.442695
    %v301 = vpow.pop %v300
    %v302 = vadd.f32 %v301, 1.0
    %v303 = vrcp.pop %v302
    %v304 = vmul.f32 %v302, %v303
    %v305 = vsub.f32 1.0, %v304
    %v306 = vmul.f32 %v303, %v305
    %v307 = vadd.f32 %v303, %v306
    %vm308 = vweird.f32 %v302
    %vm309 = vweird.f32 %v303
    %vm310 = vmor %vm308, %vm309
    %v311 = vsel %vm310, %v303, %v307
    %v312 = vand.u32 2147483647, %v302
    %vm313 = vcmp.eq.f32.partialorder %v312, 8.507059e+37
    %v314 = vand.u32 %v302, 2147483648
    %v315 = vor.u32 1.1754944e-38, %v314
    %v316 = vsel %vm313, %v315, %v311
    %v317 = vmul.f32 1.0, %v316
    %v319 = vperm.slane %v277, 0
    %v321 = vadd.f32 %v275, %v319
    %v322 = vmul.f32 %v297, %v321
    %v323 = vadd.f32 %v167, %v322
    %v324 = vtanh.pop %v323
    %v325 = vsub.f32 %v83, %v324
    %v326 = vmul.f32 %v317, %v325
    %v327 = vadd.f32 %v324, %v326
    %328 = vst [vmem:[#allocation10] sm:$0xff] %v327
    // Predicated region
    $region42: #{tpu_custom_call.1} parent=1 // pred_check
      _
    $region43: #{tpu_custom_call.1} parent=1 // pred_check_branch
      %330 = sbr.rel (0) target = $region45
    $region44: #{tpu_custom_call.1} parent=1 // pred_region
      %332 = vsyncadd [#allocation4], 0
      %s334 = sshll.u32 [#allocation10], 4
      %s335 = int_to_ptr.vmem [resolvable:$true] %s334
      %s336 = sshll.u32 %s6, 4
      %s337 = int_to_ptr.hbm [resolvable:$true] %s336
      %339 = dma.vmem_to_hbm [thread:$0]  %s335, 128, %s337, [#allocation4]
    $region45: #{tpu_custom_call.1} parent=1 // pred_fallthru
      _
    // Predicated region
    $region46: #{tpu_custom_call.1} parent=1 // pred_check
      _
    $region47: #{tpu_custom_call.1} parent=1 // pred_check_branch
      %341 = sbr.rel (0) target = $region49
    $region48: #{tpu_custom_call.1} parent=1 // pred_region
      %343 = dma.done [#allocation4], 128
    $region49: #{tpu_custom_call.1} parent=1 // pred_fallthru
      _
    %344 = vsyncpa [#allocation3], 1
    %345 = vsyncpa [#allocation6], 1
    %346 = vsyncpa [#allocation9], 1
    %347 = vsyncpa [#allocation4], 1

</llo_original>
